<compile_context>
chip_gen: v5e
topology: v5e:2x2
jax: 0.10.0
libtpu: 0.0.40
codegen_flags: <defaults>
</compile_context>

<pallas_src>
import functools

import jax
import jax.numpy as jnp
from jax.experimental import pallas as pl
from jax.experimental.pallas import tpu as pltpu


_SQRT_2_OVER_PI = 0.7978845608028654
_GELU_COEFF = 0.044715


def _gelu_tanh(x):
    # tanh-approximate GELU: the transcendental issues on the EUP slot, leaving
    # only a handful of VALU ops per element (vs ~30 for the exact erf form).
    x3 = x * x * x
    return 0.5 * x * (1.0 + jnp.tanh(_SQRT_2_OVER_PI * (x + _GELU_COEFF * x3)))


def mlp_gelu_kernel(x_ref, w1_ref, b1_ref, w2_ref, b2_ref, w3_ref, b3_ref,
                    o_ref, *, bf16_matmul=False):
    # Shapes (transposed layout, samples on lanes):
    #   x_ref  : (1, tn)   sample values
    #   w1_ref : (H, 1)    first-layer weight column
    #   b1_ref : (H, 1)
    #   w2_ref : (H, H)    second-layer weight, pre-transposed (W2^T)
    #   b2_ref : (H, 1)
    #   w3_ref : (1, H)    third-layer weight row
    #   b3_ref : (1, 1)
    #   o_ref  : (1, tn)   lane-dense output slab
    x_row = x_ref[...]                                                    # (1, tn)

    # Layer 1: K=1 "matmul" is a degenerate outer product -> VPU broadcast FMA.
    h1 = _gelu_tanh(w1_ref[...] * x_row + b1_ref[...])                    # (H, tn)

    # Layer 2: the only real matmul (H x H x tn) -> MXU, f32 accumulation.
    if bf16_matmul:
        h1 = h1.astype(jnp.bfloat16)          # w2_ref is already bf16 (wrapper)
    h2 = jnp.dot(w2_ref[...], h1,
                 preferred_element_type=jnp.float32) + b2_ref[...]        # (H, tn)
    h2 = _gelu_tanh(h2)

    # Layer 3: (1,H) @ (H,tn) on the MXU -> result stays lane-dense (1, tn).
    y = jnp.dot(w3_ref[...], h2,
                preferred_element_type=jnp.float32) + b3_ref[...]         # (1, tn)
    o_ref[...] = y.astype(o_ref.dtype)


def _pick_tile(n_pad, preferred=1024):
    """Pick a lane tile (multiple of 128) dividing n_pad.

    Small n_pad -> a single grid step (extra steps are pure ~0.35 us/step
    overhead on single-TC v5e/v6e and pipeline nothing).  Large n_pad ->
    prefer >= 4 grid steps so v7x's 2 TensorCores each get >= 2 steps to
    overlap the x/y DMAs and per-step epilogue with compute.
    """
    if n_pad <= 512:
        return n_pad
    candidates = [t for t in range(128, n_pad + 1, 128) if n_pad % t == 0]
    for min_steps in (4, 2, 1):
        pool = [t for t in candidates
                if n_pad // t >= min_steps and t <= preferred]
        if pool:
            return max(pool)
    return min(candidates)


def mlp_gelu(x, w1, b1, w2, b2, w3, b3, *, tn=None, bf16_matmul=False):
    """Fused MLP forward.  x: (..., 1).  Weights are (in, out), biases (out,),
    i.e. the math is y = gelu(gelu(x @ W1 + b1) @ W2 + b2) @ W3 + b3."""
    orig_shape = x.shape
    assert orig_shape[-1] == 1, "last dim must be the in_features=1 axis"
    H = w1.shape[1]

    n = 1
    for d in orig_shape[:-1]:
        n *= d

    # Lane-dense layout: flatten samples onto the lane axis, pad to 128.
    n_pad = max(128, ((n + 127) // 128) * 128)
    x_flat = x.reshape(n)
    if n_pad != n:
        x_flat = jnp.pad(x_flat, (0, n_pad - n))
    x_row = x_flat.reshape(1, n_pad)

    if tn is None:
        tn = _pick_tile(n_pad)
    assert n_pad % tn == 0 and tn % 128 == 0

    # Pre-transpose parameters once in the wrapper (layout plumbing, not compute).
    w1_col = w1.reshape(H, 1)
    b1_col = b1.reshape(H, 1)
    w2_t = w2.T                       # (H, H): kernel computes W2^T @ h1_t
    if bf16_matmul:
        w2_t = w2_t.astype(jnp.bfloat16)
    b2_col = b2.reshape(H, 1)
    w3_row = w3.reshape(1, H)         # (1, H): kernel computes w3_row @ h2_t
    b3_2d = b3.reshape(1, 1)

    const = lambda shape: pl.BlockSpec(shape, lambda i: (0, 0))

    # Advisory cost: tiny by I/O (8 bytes/sample) but compute/transcendental bound.
    cost = pl.CostEstimate(
        flops=2 * H * H * n_pad + 10 * H * n_pad,
        transcendentals=2 * H * n_pad,
        bytes_accessed=8 * n_pad + 4 * (H * H + 4 * H + 1),
    )

    kernel = functools.partial(mlp_gelu_kernel, bf16_matmul=bf16_matmul)

    y_row = pl.pallas_call(
        kernel,
        out_shape=jax.ShapeDtypeStruct((1, n_pad), x.dtype),
        grid_spec=pltpu.PrefetchScalarGridSpec(
            num_scalar_prefetch=0,
            grid=(n_pad // tn,),
            in_specs=[
                pl.BlockSpec((1, tn), lambda i: (0, i)),   # x samples (lane-dense)
                const((H, 1)),                             # w1 column (grid-resident)
                const((H, 1)),                             # b1
                const((H, H)),                             # W2^T
                const((H, 1)),                             # b2
                const((1, H)),                             # w3 row
                const((1, 1)),                             # b3
            ],
            out_specs=pl.BlockSpec((1, tn), lambda i: (0, i)),
        ),
        compiler_params=pltpu.CompilerParams(
            dimension_semantics=("parallel",)),
        cost_estimate=cost,
    )(x_row, w1_col, b1_col, w2_t, b2_col, w3_row, b3_2d)

    y = y_row.reshape(n_pad)[:n]
    return y.reshape(orig_shape)


def init_params(hidden_size=64, dtype=jnp.float32, seed=42):
    # Deterministic synthetic init (mimics nn.Linear's uniform(-1/sqrt(fan_in), +)).
    key = jax.random.PRNGKey(seed)
    ks = jax.random.split(key, 6)

    def lin(kw, kb, fan_in, fan_out):
        bound = 1.0 / jnp.sqrt(jnp.array(fan_in, dtype))
        w = jax.random.uniform(kw, (fan_in, fan_out), dtype, -bound, bound)
        b = jax.random.uniform(kb, (fan_out,), dtype, -bound, bound)
        return w, b

    w1, b1 = lin(ks[0], ks[1], 1, hidden_size)
    w2, b2 = lin(ks[2], ks[3], hidden_size, hidden_size)
    w3, b3 = lin(ks[4], ks[5], hidden_size, 1)
    return w1, b1, w2, b2, w3, b3


def reference_tanh(x, w1, b1, w2, b2, w3, b3):
    # Same math as the kernel (tanh GELU) -> tight tolerance check.
    h = jax.nn.gelu(x @ w1 + b1, approximate=True)
    h = jax.nn.gelu(h @ w2 + b2, approximate=True)
    return h @ w3 + b3


def reference_exact(x, w1, b1, w2, b2, w3, b3):
    # PyTorch nn.GELU() default (exact erf) -> semantic check, looser tolerance.
    h = jax.nn.gelu(x @ w1 + b1, approximate=False)
    h = jax.nn.gelu(h @ w2 + b2, approximate=False)
    return h @ w3 + b3


if __name__ == "__main__":
    hidden_size = 64
    # Small shapes consistent with the module: x is (..., 1); here (2, 128, 1)
    # -> 256 samples -> one lane-dense grid step of 256.
    x = jax.random.normal(jax.random.PRNGKey(0), (2, 128, 1), jnp.float32)
    w1, b1, w2, b2, w3, b3 = init_params(hidden_size)

    out = mlp_gelu(x, w1, b1, w2, b2, w3, b3)
    out = jax.block_until_ready(out)

    assert out.shape == x.shape, out.shape

    # Tight check vs. the same (tanh-GELU) math: kernel correctness.
    ref_t = reference_tanh(x, w1, b1, w2, b2, w3, b3)
    assert jnp.allclose(out, ref_t, atol=1e-4, rtol=1e-4), float(
        jnp.max(jnp.abs(out - ref_t)))

    # Loose check vs. the PyTorch-default exact-erf GELU (module semantics).
    ref_e = reference_exact(x, w1, b1, w2, b2, w3, b3)
    assert jnp.allclose(out, ref_e, atol=5e-3, rtol=5e-3), float(
        jnp.max(jnp.abs(out - ref_e)))

    print("KERNEL_OK")
</pallas_src>

<mosaic_0001>
module attributes {stable_mosaic.version = 11 : i64} {
  func.func @mlp_gelu_kernel(%arg0: i32, %arg1: memref<1x256xf32, #tpu.memory_space<vmem>>, %arg2: memref<64x1xf32, #tpu.memory_space<vmem>>, %arg3: memref<64x1xf32, #tpu.memory_space<vmem>>, %arg4: memref<64x64xf32, #tpu.memory_space<vmem>>, %arg5: memref<64x1xf32, #tpu.memory_space<vmem>>, %arg6: memref<1x64xf32, #tpu.memory_space<vmem>>, %arg7: memref<1x1xf32, #tpu.memory_space<vmem>>, %arg8: memref<1x256xf32, #tpu.memory_space<vmem>>) attributes {dimension_semantics = [#tpu.dimension_semantics<parallel>], iteration_bounds = array<i64: 1>, scalar_prefetch = 0 : i64, scratch_operands = 0 : i64, tpu.core_type = #tpu.core_type<tc>, window_params = [{transform_indices = @transform_0, window_bounds = array<i64: 1, 256>}, {pipeline_mode = #tpu.pipeline_mode<synchronous>, transform_indices = @transform_1, window_bounds = array<i64: 64, 1>}, {pipeline_mode = #tpu.pipeline_mode<synchronous>, transform_indices = @transform_2, window_bounds = array<i64: 64, 1>}, {pipeline_mode = #tpu.pipeline_mode<synchronous>, transform_indices = @transform_3, window_bounds = array<i64: 64, 64>}, {pipeline_mode = #tpu.pipeline_mode<synchronous>, transform_indices = @transform_4, window_bounds = array<i64: 64, 1>}, {pipeline_mode = #tpu.pipeline_mode<synchronous>, transform_indices = @transform_5, window_bounds = array<i64: 1, 64>}, {pipeline_mode = #tpu.pipeline_mode<synchronous>, transform_indices = @transform_6, window_bounds = array<i64: 1, 1>}, {transform_indices = @transform_7, window_bounds = array<i64: 1, 256>}]} {
    %c0 = arith.constant 0 : index
    %c0_0 = arith.constant 0 : index
    %0 = vector.load %arg1[%c0, %c0_0] : memref<1x256xf32, #tpu.memory_space<vmem>>, vector<1x256xf32>
    %c0_1 = arith.constant 0 : index
    %c0_2 = arith.constant 0 : index
    %1 = vector.load %arg2[%c0_1, %c0_2] : memref<64x1xf32, #tpu.memory_space<vmem>>, vector<64x1xf32>
    %2 = vector.broadcast %1 : vector<64x1xf32> to vector<64x256xf32>
    %3 = vector.broadcast %0 : vector<1x256xf32> to vector<64x256xf32>
    %4 = arith.mulf %2, %3 : vector<64x256xf32>
    %c0_3 = arith.constant 0 : index
    %c0_4 = arith.constant 0 : index
    %5 = vector.load %arg3[%c0_3, %c0_4] : memref<64x1xf32, #tpu.memory_space<vmem>>, vector<64x1xf32>
    %6 = vector.broadcast %5 : vector<64x1xf32> to vector<64x256xf32>
    %7 = arith.addf %4, %6 : vector<64x256xf32>
    %8 = arith.mulf %7, %7 : vector<64x256xf32>
    %9 = arith.mulf %8, %7 : vector<64x256xf32>
    %cst = arith.constant 5.000000e-01 : f32
    %10 = vector.broadcast %cst : f32 to vector<64x256xf32>
    %11 = arith.mulf %10, %7 : vector<64x256xf32>
    %cst_5 = arith.constant 4.471500e-02 : f32
    %12 = vector.broadcast %cst_5 : f32 to vector<64x256xf32>
    %13 = arith.mulf %12, %9 : vector<64x256xf32>
    %14 = arith.addf %7, %13 : vector<64x256xf32>
    %cst_6 = arith.constant 0.797884583 : f32
    %15 = vector.broadcast %cst_6 : f32 to vector<64x256xf32>
    %16 = arith.mulf %15, %14 : vector<64x256xf32>
    %17 = math.tanh %16 : vector<64x256xf32>
    %cst_7 = arith.constant 1.000000e+00 : f32
    %18 = vector.broadcast %cst_7 : f32 to vector<64x256xf32>
    %19 = arith.addf %18, %17 : vector<64x256xf32>
    %20 = arith.mulf %11, %19 : vector<64x256xf32>
    %c0_8 = arith.constant 0 : index
    %c0_9 = arith.constant 0 : index
    %21 = vector.load %arg4[%c0_8, %c0_9] : memref<64x64xf32, #tpu.memory_space<vmem>>, vector<64x64xf32>
    %cst_10 = arith.constant dense<0.000000e+00> : vector<64x256xf32>
    %22 = tpu.matmul %21, %20, %cst_10 {dimension_numbers = #tpu.dot_dimension_numbers<[1], [0], [0], [1], [0, 0, 1, 1], [], []>} : vector<64x64xf32>, vector<64x256xf32>, vector<64x256xf32> -> vector<64x256xf32>
    %c0_11 = arith.constant 0 : index
    %c0_12 = arith.constant 0 : index
    %23 = vector.load %arg5[%c0_11, %c0_12] : memref<64x1xf32, #tpu.memory_space<vmem>>, vector<64x1xf32>
    %24 = vector.broadcast %23 : vector<64x1xf32> to vector<64x256xf32>
    %25 = arith.addf %22, %24 : vector<64x256xf32>
    %26 = arith.mulf %25, %25 : vector<64x256xf32>
    %27 = arith.mulf %26, %25 : vector<64x256xf32>
    %cst_13 = arith.constant 5.000000e-01 : f32
    %28 = vector.broadcast %cst_13 : f32 to vector<64x256xf32>
    %29 = arith.mulf %28, %25 : vector<64x256xf32>
    %cst_14 = arith.constant 4.471500e-02 : f32
    %30 = vector.broadcast %cst_14 : f32 to vector<64x256xf32>
    %31 = arith.mulf %30, %27 : vector<64x256xf32>
    %32 = arith.addf %25, %31 : vector<64x256xf32>
    %cst_15 = arith.constant 0.797884583 : f32
    %33 = vector.broadcast %cst_15 : f32 to vector<64x256xf32>
    %34 = arith.mulf %33, %32 : vector<64x256xf32>
    %35 = math.tanh %34 : vector<64x256xf32>
    %cst_16 = arith.constant 1.000000e+00 : f32
    %36 = vector.broadcast %cst_16 : f32 to vector<64x256xf32>
    %37 = arith.addf %36, %35 : vector<64x256xf32>
    %38 = arith.mulf %29, %37 : vector<64x256xf32>
    %c0_17 = arith.constant 0 : index
    %c0_18 = arith.constant 0 : index
    %39 = vector.load %arg6[%c0_17, %c0_18] : memref<1x64xf32, #tpu.memory_space<vmem>>, vector<1x64xf32>
    %cst_19 = arith.constant dense<0.000000e+00> : vector<1x256xf32>
    %40 = tpu.matmul %39, %38, %cst_19 {dimension_numbers = #tpu.dot_dimension_numbers<[1], [0], [0], [1], [0, 0, 1, 1], [], []>} : vector<1x64xf32>, vector<64x256xf32>, vector<1x256xf32> -> vector<1x256xf32>
    %c0_20 = arith.constant 0 : index
    %c0_21 = arith.constant 0 : index
    %41 = vector.load %arg7[%c0_20, %c0_21] : memref<1x1xf32, #tpu.memory_space<vmem>>, vector<1x1xf32>
    %42 = vector.broadcast %41 : vector<1x1xf32> to vector<1x256xf32>
    %43 = arith.addf %40, %42 : vector<1x256xf32>
    %c0_22 = arith.constant 0 : index
    %c0_23 = arith.constant 0 : index
    %44 = vector.load %arg8[%c0_22, %c0_23] : memref<1x256xf32, #tpu.memory_space<vmem>>, vector<1x256xf32>
    tpu.vector_store %arg8[%c0_22, %c0_23], %43 {strides = array<i32>} : memref<1x256xf32, #tpu.memory_space<vmem>>, vector<1x256xf32>,
    return
  }
  func.func @transform_0(%arg0: i32) -> (i32, i32) {
    %c0_i32 = arith.constant 0 : i32
    %c0_i32_0 = arith.constant 0 : i32
    return %c0_i32, %arg0 : i32, i32
  }
  func.func @transform_1(%arg0: i32) -> (i32, i32) {
    %c0_i32 = arith.constant 0 : i32
    %c0_i32_0 = arith.constant 0 : i32
    %c0_i32_1 = arith.constant 0 : i32
    return %c0_i32, %c0_i32_0 : i32, i32
  }
  func.func @transform_2(%arg0: i32) -> (i32, i32) {
    %c0_i32 = arith.constant 0 : i32
    %c0_i32_0 = arith.constant 0 : i32
    %c0_i32_1 = arith.constant 0 : i32
    return %c0_i32, %c0_i32_0 : i32, i32
  }
  func.func @transform_3(%arg0: i32) -> (i32, i32) {
    %c0_i32 = arith.constant 0 : i32
    %c0_i32_0 = arith.constant 0 : i32
    %c0_i32_1 = arith.constant 0 : i32
    return %c0_i32, %c0_i32_0 : i32, i32
  }
  func.func @transform_4(%arg0: i32) -> (i32, i32) {
    %c0_i32 = arith.constant 0 : i32
    %c0_i32_0 = arith.constant 0 : i32
    %c0_i32_1 = arith.constant 0 : i32
    return %c0_i32, %c0_i32_0 : i32, i32
  }
  func.func @transform_5(%arg0: i32) -> (i32, i32) {
    %c0_i32 = arith.constant 0 : i32
    %c0_i32_0 = arith.constant 0 : i32
    %c0_i32_1 = arith.constant 0 : i32
    return %c0_i32, %c0_i32_0 : i32, i32
  }
  func.func @transform_6(%arg0: i32) -> (i32, i32) {
    %c0_i32 = arith.constant 0 : i32
    %c0_i32_0 = arith.constant 0 : i32
    %c0_i32_1 = arith.constant 0 : i32
    return %c0_i32, %c0_i32_0 : i32, i32
  }
  func.func @transform_7(%arg0: i32) -> (i32, i32) {
    %c0_i32 = arith.constant 0 : i32
    %c0_i32_0 = arith.constant 0 : i32
    return %c0_i32, %arg0 : i32, i32
  }
}

</mosaic_0001>

<llo_original>
// kernel: tpu_custom_call.1
$region0: #{tpu_custom_call.1}
  #allocation0 [shape = 'u32[]', space=smem, size = 0x4, offset = 0x4, fixed_abs, tag = 'smem constant byte address 0x4 - core index']
  #allocation1 [shape = 'u32[72,128]{1,0:T(1,128)}', space=vmem, size = 0x9000, scoped, tag = 'internal scratch']
  #allocation2 [shape = 'f32[1,1]{1,0:T(1,128)S(1)}', space=vmem, size = 0x200, scoped, tag = 'scoped memory for tpu_custom_call.1']
  %s0 = inlined_call_operand.vmem [shape: f32[1,256], index: 0, kind: input, shape index: {}]
  %s1 = inlined_call_operand.vmem [shape: f32[64,1], index: 1, kind: input, shape index: {}]
  %s2 = inlined_call_operand.vmem [shape: f32[64,1], index: 2, kind: input, shape index: {}]
  %s3 = inlined_call_operand.vmem [shape: f32[64,64], index: 3, kind: input, shape index: {}]
  %s4 = inlined_call_operand.vmem [shape: f32[64,1], index: 4, kind: input, shape index: {}]
  %s5 = inlined_call_operand.vmem [shape: f32[1,64], index: 5, kind: input, shape index: {}]
  %s6 = inlined_call_operand.<no memory space> [shape: f32[1,1], index: 6, kind: input, shape index: {}]
  %s7 = inlined_call_operand.hbm [shape: f32[1,256], index: 7, kind: output, shape index: {}]
  %s8 = sld [smem:[#allocation0]]
  $region38: #{tpu_custom_call.1} parent=0
    _
  %s10 = ssub.s32 1, %s8
  %s11 = scalar_select 0, %s10, %s8
  %v12 = vstv %s6
  %13 = vst [vmem:[#allocation2] sm:$0x1] %v12
  $region1: #{tpu_custom_call.1} parent=0
    #allocation3 [shape = 'u8[1024]{0}', space=vmem, size = 0x400, scoped, tag = 'output window, operand 0, single buffered']
    #allocation4 [shape = 's32[1]{0}', space=sflag, size = 0x4, scoped, tag = 'scoped memory for tpu_custom_call.1']
    %14 = vsyncpa [#allocation4], 0
    // Predicated region
    $region2: #{tpu_custom_call.1} parent=1 // pred_check
      _
    $region3: #{tpu_custom_call.1} parent=1 // pred_check_branch
      %16 = sbr.rel (0) target = $region5
    $region4: #{tpu_custom_call.1} parent=1 // pred_region
      _
    $region5: #{tpu_custom_call.1} parent=1 // pred_fallthru
      _
    // Predicated region
    $region6: #{tpu_custom_call.1} parent=1 // pred_check
      _
    $region7: #{tpu_custom_call.1} parent=1 // pred_check_branch
      %18 = sbr.rel (0) target = $region9
    $region8: #{tpu_custom_call.1} parent=1 // pred_region
      _
    $region9: #{tpu_custom_call.1} parent=1 // pred_fallthru
      _
    // Predicated region
    $region10: #{tpu_custom_call.1} parent=1 // pred_check
      _
    $region11: #{tpu_custom_call.1} parent=1 // pred_check_branch
      %20 = sbr.rel (0) target = $region13
    $region12: #{tpu_custom_call.1} parent=1 // pred_region
      _
    $region13: #{tpu_custom_call.1} parent=1 // pred_fallthru
      _
    // Predicated region
    $region14: #{tpu_custom_call.1} parent=1 // pred_check
      _
    $region15: #{tpu_custom_call.1} parent=1 // pred_check_branch
      %22 = sbr.rel (0) target = $region17
    $region16: #{tpu_custom_call.1} parent=1 // pred_region
      _
    $region17: #{tpu_custom_call.1} parent=1 // pred_fallthru
      _
    // Predicated region
    $region18: #{tpu_custom_call.1} parent=1 // pred_check
      _
    $region19: #{tpu_custom_call.1} parent=1 // pred_check_branch
      %24 = sbr.rel (0) target = $region21
    $region20: #{tpu_custom_call.1} parent=1 // pred_region
      _
    $region21: #{tpu_custom_call.1} parent=1 // pred_fallthru
      _
    // Predicated region
    $region22: #{tpu_custom_call.1} parent=1 // pred_check
      _
    $region23: #{tpu_custom_call.1} parent=1 // pred_check_branch
      %26 = sbr.rel (0) target = $region25
    $region24: #{tpu_custom_call.1} parent=1 // pred_region
      _
    $region25: #{tpu_custom_call.1} parent=1 // pred_fallthru
      _
    // Predicated region
    $region26: #{tpu_custom_call.1} parent=1 // pred_check
      _
    $region27: #{tpu_custom_call.1} parent=1 // pred_check_branch
      %28 = sbr.rel (0) target = $region29
    $region28: #{tpu_custom_call.1} parent=1 // pred_region
      _
    $region29: #{tpu_custom_call.1} parent=1 // pred_fallthru
      _
    %v29 = vld [vmem:[%s0] sm:$0x3]
    %v30 = vld [vmem:[%s1] sm:$0xff]
    %v31 = vld [vmem:[%s1 + $0x8] sm:$0xff]
    %v32 = vld [vmem:[%s1 + $0x10] sm:$0xff]
    %v33 = vld [vmem:[%s1 + $0x18] sm:$0xff]
    %v34 = vld [vmem:[%s1 + $0x20] sm:$0xff]
    %v35 = vld [vmem:[%s1 + $0x28] sm:$0xff]
    %v36 = vld [vmem:[%s1 + $0x30] sm:$0xff]
    %v37 = vld [vmem:[%s1 + $0x38] sm:$0xff]
    %39 = vset.pattern.permute.xlu0 0
    %40 = vperm.xlu0 %39, %v30
    %v41 = vpop.permute.xlu0 %40
    %44 = vset.pattern.permute.xlu0 0
    %45 = vperm.xlu0 %44, %v31
    %v46 = vpop.permute.xlu0 %45
    %49 = vset.pattern.permute.xlu0 0
    %50 = vperm.xlu0 %49, %v32
    %v51 = vpop.permute.xlu0 %50
    %54 = vset.pattern.permute.xlu0 0
    %55 = vperm.xlu0 %54, %v33
    %v56 = vpop.permute.xlu0 %55
    %59 = vset.pattern.permute.xlu0 0
    %60 = vperm.xlu0 %59, %v34
    %v61 = vpop.permute.xlu0 %60
    %64 = vset.pattern.permute.xlu0 0
    %65 = vperm.xlu0 %64, %v35
    %v66 = vpop.permute.xlu0 %65
    %69 = vset.pattern.permute.xlu0 0
    %70 = vperm.xlu0 %69, %v36
    %v71 = vpop.permute.xlu0 %70
    %74 = vset.pattern.permute.xlu0 0
    %75 = vperm.xlu0 %74, %v37
    %v76 = vpop.permute.xlu0 %75
    %v79 = vperm.slane %v29, 0
    %v80 = vperm.slane %v29, 1
    %v83 = vmul.f32 %v41, %v79
    %v84 = vmul.f32 %v41, %v80
    %v85 = vmul.f32 %v46, %v79
    %v86 = vmul.f32 %v46, %v80
    %v87 = vmul.f32 %v51, %v79
    %v88 = vmul.f32 %v51, %v80
    %v89 = vmul.f32 %v56, %v79
    %v90 = vmul.f32 %v56, %v80
    %v91 = vmul.f32 %v61, %v79
    %v92 = vmul.f32 %v61, %v80
    %v93 = vmul.f32 %v66, %v79
    %v94 = vmul.f32 %v66, %v80
    %v95 = vmul.f32 %v71, %v79
    %v96 = vmul.f32 %v71, %v80
    %v97 = vmul.f32 %v76, %v79
    %v98 = vmul.f32 %v76, %v80
    %v99 = vld [vmem:[%s2] sm:$0xff]
    %v100 = vld [vmem:[%s2 + $0x8] sm:$0xff]
    %v101 = vld [vmem:[%s2 + $0x10] sm:$0xff]
    %v102 = vld [vmem:[%s2 + $0x18] sm:$0xff]
    %v103 = vld [vmem:[%s2 + $0x20] sm:$0xff]
    %v104 = vld [vmem:[%s2 + $0x28] sm:$0xff]
    %v105 = vld [vmem:[%s2 + $0x30] sm:$0xff]
    %v106 = vld [vmem:[%s2 + $0x38] sm:$0xff]
    %108 = vset.pattern.permute.xlu0 0
    %109 = vperm.xlu0 %108, %v99
    %v110 = vpop.permute.xlu0 %109
    %113 = vset.pattern.permute.xlu0 0
    %114 = vperm.xlu0 %113, %v100
    %v115 = vpop.permute.xlu0 %114
    %118 = vset.pattern.permute.xlu0 0
    %119 = vperm.xlu0 %118, %v101
    %v120 = vpop.permute.xlu0 %119
    %123 = vset.pattern.permute.xlu0 0
    %124 = vperm.xlu0 %123, %v102
    %v125 = vpop.permute.xlu0 %124
    %128 = vset.pattern.permute.xlu0 0
    %129 = vperm.xlu0 %128, %v103
    %v130 = vpop.permute.xlu0 %129
    %133 = vset.pattern.permute.xlu0 0
    %134 = vperm.xlu0 %133, %v104
    %v135 = vpop.permute.xlu0 %134
    %138 = vset.pattern.permute.xlu0 0
    %139 = vperm.xlu0 %138, %v105
    %v140 = vpop.permute.xlu0 %139
    %143 = vset.pattern.permute.xlu0 0
    %144 = vperm.xlu0 %143, %v106
    %v145 = vpop.permute.xlu0 %144
    %v147 = vadd.f32 %v83, %v110
    %v148 = vadd.f32 %v84, %v110
    %v149 = vadd.f32 %v85, %v115
    %v150 = vadd.f32 %v86, %v115
    %v151 = vadd.f32 %v87, %v120
    %v152 = vadd.f32 %v88, %v120
    %v153 = vadd.f32 %v89, %v125
    %v154 = vadd.f32 %v90, %v125
    %v155 = vadd.f32 %v91, %v130
    %v156 = vadd.f32 %v92, %v130
    %v157 = vadd.f32 %v93, %v135
    %v158 = vadd.f32 %v94, %v135
    %v159 = vadd.f32 %v95, %v140
    %v160 = vadd.f32 %v96, %v140
    %v161 = vadd.f32 %v97, %v145
    %v162 = vadd.f32 %v98, %v145
    %v163 = vmul.f32 %v147, %v147
    %v164 = vmul.f32 %v148, %v148
    %v165 = vmul.f32 %v149, %v149
    %v166 = vmul.f32 %v150, %v150
    %v167 = vmul.f32 %v151, %v151
    %v168 = vmul.f32 %v152, %v152
    %v169 = vmul.f32 %v153, %v153
    %v170 = vmul.f32 %v154, %v154
    %v171 = vmul.f32 %v155, %v155
    %v172 = vmul.f32 %v156, %v156
    %v173 = vmul.f32 %v157, %v157
    %v174 = vmul.f32 %v158, %v158
    %v175 = vmul.f32 %v159, %v159
    %v176 = vmul.f32 %v160, %v160
    %v177 = vmul.f32 %v161, %v161
    %v178 = vmul.f32 %v162, %v162
    %v179 = vmul.f32 %v163, %v147
    %v180 = vmul.f32 %v164, %v148
    %v181 = vmul.f32 %v165, %v149
    %v182 = vmul.f32 %v166, %v150
    %v183 = vmul.f32 %v167, %v151
    %v184 = vmul.f32 %v168, %v152
    %v185 = vmul.f32 %v169, %v153
    %v186 = vmul.f32 %v170, %v154
    %v187 = vmul.f32 %v171, %v155
    %v188 = vmul.f32 %v172, %v156
    %v189 = vmul.f32 %v173, %v157
    %v190 = vmul.f32 %v174, %v158
    %v191 = vmul.f32 %v175, %v159
    %v192 = vmul.f32 %v176, %v160
    %v193 = vmul.f32 %v177, %v161
    %v194 = vmul.f32 %v178, %v162
    %v195 = vmul.f32 %v147, 0.5
    %v196 = vmul.f32 %v148, 0.5
    %v197 = vmul.f32 %v149, 0.5
    %v198 = vmul.f32 %v150, 0.5
    %v199 = vmul.f32 %v151, 0.5
    %v200 = vmul.f32 %v152, 0.5
    %v201 = vmul.f32 %v153, 0.5
    %v202 = vmul.f32 %v154, 0.5
    %v203 = vmul.f32 %v155, 0.5
    %v204 = vmul.f32 %v156, 0.5
    %v205 = vmul.f32 %v157, 0.5
    %v206 = vmul.f32 %v158, 0.5
    %v207 = vmul.f32 %v159, 0.5
    %v208 = vmul.f32 %v160, 0.5
    %v209 = vmul.f32 %v161, 0.5
    %v210 = vmul.f32 %v162, 0.5
    %v211 = vmul.f32 %v179, 0.044715
    %v212 = vmul.f32 %v180, 0.044715
    %v213 = vmul.f32 %v181, 0.044715
    %v214 = vmul.f32 %v182, 0.044715
    %v215 = vmul.f32 %v183, 0.044715
    %v216 = vmul.f32 %v184, 0.044715
    %v217 = vmul.f32 %v185, 0.044715
    %v218 = vmul.f32 %v186, 0.044715
    %v219 = vmul.f32 %v187, 0.044715
    %v220 = vmul.f32 %v188, 0.044715
    %v221 = vmul.f32 %v189, 0.044715
    %v222 = vmul.f32 %v190, 0.044715
    %v223 = vmul.f32 %v191, 0.044715
    %v224 = vmul.f32 %v192, 0.044715
    %v225 = vmul.f32 %v193, 0.044715
    %v226 = vmul.f32 %v194, 0.044715
    %v227 = vadd.f32 %v147, %v211
    %v228 = vadd.f32 %v148, %v212
    %v229 = vadd.f32 %v149, %v213
    %v230 = vadd.f32 %v150, %v214
    %v231 = vadd.f32 %v151, %v215
    %v232 = vadd.f32 %v152, %v216
    %v233 = vadd.f32 %v153, %v217
    %v234 = vadd.f32 %v154, %v218
    %v235 = vadd.f32 %v155, %v219
    %v236 = vadd.f32 %v156, %v220
    %v237 = vadd.f32 %v157, %v221
    %v238 = vadd.f32 %v158, %v222
    %v239 = vadd.f32 %v159, %v223
    %v240 = vadd.f32 %v160, %v224
    %v241 = vadd.f32 %v161, %v225
    %v242 = vadd.f32 %v162, %v226
    %v243 = vmul.f32 %v227, 0.7978846
    %v244 = vmul.f32 %v228, 0.7978846
    %v245 = vmul.f32 %v229, 0.7978846
    %v246 = vmul.f32 %v230, 0.7978846
    %v247 = vmul.f32 %v231, 0.7978846
    %v248 = vmul.f32 %v232, 0.7978846
    %v249 = vmul.f32 %v233, 0.7978846
    %v250 = vmul.f32 %v234, 0.7978846
    %v251 = vmul.f32 %v235, 0.7978846
    %v252 = vmul.f32 %v236, 0.7978846
    %v253 = vmul.f32 %v237, 0.7978846
    %v254 = vmul.f32 %v238, 0.7978846
    %v255 = vmul.f32 %v239, 0.7978846
    %v256 = vmul.f32 %v240, 0.7978846
    %v257 = vmul.f32 %v241, 0.7978846
    %v258 = vmul.f32 %v242, 0.7978846
    %v259 = vtanh.pop %v243
    %v260 = vtanh.pop %v244
    %v261 = vtanh.pop %v245
    %v262 = vtanh.pop %v246
    %v263 = vtanh.pop %v247
    %v264 = vtanh.pop %v248
    %v265 = vtanh.pop %v249
    %v266 = vtanh.pop %v250
    %v267 = vtanh.pop %v251
    %v268 = vtanh.pop %v252
    %v269 = vtanh.pop %v253
    %v270 = vtanh.pop %v254
    %v271 = vtanh.pop %v255
    %v272 = vtanh.pop %v256
    %v273 = vtanh.pop %v257
    %v274 = vtanh.pop %v258
    %v275 = vadd.f32 %v259, 1.0
    %v276 = vadd.f32 %v260, 1.0
    %v277 = vadd.f32 %v261, 1.0
    %v278 = vadd.f32 %v262, 1.0
    %v279 = vadd.f32 %v263, 1.0
    %v280 = vadd.f32 %v264, 1.0
    %v281 = vadd.f32 %v265, 1.0
    %v282 = vadd.f32 %v266, 1.0
    %v283 = vadd.f32 %v267, 1.0
    %v284 = vadd.f32 %v268, 1.0
    %v285 = vadd.f32 %v269, 1.0
    %v286 = vadd.f32 %v270, 1.0
    %v287 = vadd.f32 %v271, 1.0
    %v288 = vadd.f32 %v272, 1.0
    %v289 = vadd.f32 %v273, 1.0
    %v290 = vadd.f32 %v274, 1.0
    %v291 = vmul.f32 %v195, %v275
    %v292 = vmul.f32 %v196, %v276
    %v293 = vmul.f32 %v197, %v277
    %v294 = vmul.f32 %v198, %v278
    %v295 = vmul.f32 %v199, %v279
    %v296 = vmul.f32 %v200, %v280
    %v297 = vmul.f32 %v201, %v281
    %v298 = vmul.f32 %v202, %v282
    %v299 = vmul.f32 %v203, %v283
    %v300 = vmul.f32 %v204, %v284
    %v301 = vmul.f32 %v205, %v285
    %v302 = vmul.f32 %v206, %v286
    %v303 = vmul.f32 %v207, %v287
    %v304 = vmul.f32 %v208, %v288
    %v305 = vmul.f32 %v209, %v289
    %v306 = vmul.f32 %v210, %v290
    %v307 = vld [vmem:[%s3] sm:$0xff]
    %v308 = vld [vmem:[%s3 + $0x8] sm:$0xff]
    %v309 = vld [vmem:[%s3 + $0x10] sm:$0xff]
    %v310 = vld [vmem:[%s3 + $0x18] sm:$0xff]
    %v311 = vld [vmem:[%s3 + $0x20] sm:$0xff]
    %v312 = vld [vmem:[%s3 + $0x28] sm:$0xff]
    %v313 = vld [vmem:[%s3 + $0x30] sm:$0xff]
    %v314 = vld [vmem:[%s3 + $0x38] sm:$0xff]
    %v315 = vld [vmem:[%s4] sm:$0xff]
    %v316 = vld [vmem:[%s4 + $0x8] sm:$0xff]
    %v317 = vld [vmem:[%s4 + $0x10] sm:$0xff]
    %v318 = vld [vmem:[%s4 + $0x18] sm:$0xff]
    %v319 = vld [vmem:[%s4 + $0x20] sm:$0xff]
    %v320 = vld [vmem:[%s4 + $0x28] sm:$0xff]
    %v321 = vld [vmem:[%s4 + $0x30] sm:$0xff]
    %v322 = vld [vmem:[%s4 + $0x38] sm:$0xff]
    %324 = vset.pattern.permute.xlu0 0
    %325 = vperm.xlu0 %324, %v315
    %v326 = vpop.permute.xlu0 %325
    %329 = vset.pattern.permute.xlu0 0
    %330 = vperm.xlu0 %329, %v316
    %v331 = vpop.permute.xlu0 %330
    %334 = vset.pattern.permute.xlu0 0
    %335 = vperm.xlu0 %334, %v317
    %v336 = vpop.permute.xlu0 %335
    %339 = vset.pattern.permute.xlu0 0
    %340 = vperm.xlu0 %339, %v318
    %v341 = vpop.permute.xlu0 %340
    %344 = vset.pattern.permute.xlu0 0
    %345 = vperm.xlu0 %344, %v319
    %v346 = vpop.permute.xlu0 %345
    %349 = vset.pattern.permute.xlu0 0
    %350 = vperm.xlu0 %349, %v320
    %v351 = vpop.permute.xlu0 %350
    %354 = vset.pattern.permute.xlu0 0
    %355 = vperm.xlu0 %354, %v321
    %v356 = vpop.permute.xlu0 %355
    %359 = vset.pattern.permute.xlu0 0
    %360 = vperm.xlu0 %359, %v322
    %v361 = vpop.permute.xlu0 %360
    %vm363 = vcmask 523264
    %v365 = vsel %vm363, %v307, 0
    %v368 = vsel %vm363, %v308, 0
    %v371 = vsel %vm363, %v309, 0
    %v374 = vsel %vm363, %v310, 0
    %v377 = vsel %vm363, %v311, 0
    %v380 = vsel %vm363, %v312, 0
    %v383 = vsel %vm363, %v313, 0
    %v386 = vsel %vm363, %v314, 0
    %388 = vmatpush.msra.mxu0 0.0
    %389 = vmatpush.msra.mxu0 0.0
    %390 = vmatpush.msra.mxu0 0.0
    %391 = vmatpush.msra.mxu0 0.0
    %392 = vmatpush.msra.mxu0 0.0
    %393 = vmatpush.msra.mxu0 0.0
    %394 = vmatpush.msra.mxu0 0.0
    %395 = vmatpush.msra.mxu0 0.0
    %396 = vmatpush.msra.mxu0 %v305
    %397 = vmatpush.msra.mxu0 %v303
    %398 = vmatpush.msra.mxu0 %v301
    %399 = vmatpush.msra.mxu0 %v299
    %400 = vmatpush.msra.mxu0 %v297
    %401 = vmatpush.msra.mxu0 %v295
    %402 = vmatpush.msra.mxu0 %v293
    %403 = vmatpush.msra.mxu0 %v291
    %404 = vmatmul.f32.gmra.mxu0 %v365
    %v405 = vpop.f32.mrf.mxu0
    %v406 = vadd.f32 %v326, %v405
    %407 = vmatmul.f32.gmra.mxu0 %v368
    %v408 = vpop.f32.mrf.mxu0
    %v409 = vadd.f32 %v331, %v408
    %410 = vmatmul.f32.gmra.mxu0 %v371
    %v411 = vpop.f32.mrf.mxu0
    %v412 = vadd.f32 %v336, %v411
    %413 = vmatmul.f32.gmra.mxu0 %v374
    %v414 = vpop.f32.mrf.mxu0
    %v415 = vadd.f32 %v341, %v414
    %416 = vmatmul.f32.gmra.mxu0 %v377
    %v417 = vpop.f32.mrf.mxu0
    %v418 = vadd.f32 %v346, %v417
    %419 = vmatmul.f32.gmra.mxu0 %v380
    %v420 = vpop.f32.mrf.mxu0
    %v421 = vadd.f32 %v351, %v420
    %422 = vmatmul.f32.gmra.mxu0 %v383
    %v423 = vpop.f32.mrf.mxu0
    %v424 = vadd.f32 %v356, %v423
    %425 = vmatmul.f32.gmra.mxu0 %v386
    %v426 = vpop.f32.mrf.mxu0
    %v427 = vadd.f32 %v361, %v426
    %428 = vdwg.mxu0
    %429 = vmatpush.msra.mxu0 0.0
    %430 = vmatpush.msra.mxu0 0.0
    %431 = vmatpush.msra.mxu0 0.0
    %432 = vmatpush.msra.mxu0 0.0
    %433 = vmatpush.msra.mxu0 0.0
    %434 = vmatpush.msra.mxu0 0.0
    %435 = vmatpush.msra.mxu0 0.0
    %436 = vmatpush.msra.mxu0 0.0
    %437 = vmatpush.msra.mxu0 %v306
    %438 = vmatpush.msra.mxu0 %v304
    %439 = vmatpush.msra.mxu0 %v302
    %440 = vmatpush.msra.mxu0 %v300
    %441 = vmatpush.msra.mxu0 %v298
    %442 = vmatpush.msra.mxu0 %v296
    %443 = vmatpush.msra.mxu0 %v294
    %444 = vmatpush.msra.mxu0 %v292
    %445 = vmatmul.f32.gmra.mxu0 %v365
    %v446 = vpop.f32.mrf.mxu0
    %v447 = vadd.f32 %v326, %v446
    %448 = vmatmul.f32.gmra.mxu0 %v368
    %v449 = vpop.f32.mrf.mxu0
    %v450 = vadd.f32 %v331, %v449
    %451 = vmatmul.f32.gmra.mxu0 %v371
    %v452 = vpop.f32.mrf.mxu0
    %v453 = vadd.f32 %v336, %v452
    %454 = vmatmul.f32.gmra.mxu0 %v374
    %v455 = vpop.f32.mrf.mxu0
    %v456 = vadd.f32 %v341, %v455
    %457 = vmatmul.f32.gmra.mxu0 %v377
    %v458 = vpop.f32.mrf.mxu0
    %v459 = vadd.f32 %v346, %v458
    %460 = vmatmul.f32.gmra.mxu0 %v380
    %v461 = vpop.f32.mrf.mxu0
    %v462 = vadd.f32 %v351, %v461
    %463 = vmatmul.f32.gmra.mxu0 %v383
    %v464 = vpop.f32.mrf.mxu0
    %v465 = vadd.f32 %v356, %v464
    %466 = vmatmul.f32.gmra.mxu0 %v386
    %v467 = vpop.f32.mrf.mxu0
    %v468 = vadd.f32 %v361, %v467
    %469 = vdwg.mxu0
    %v470 = vmul.f32 %v406, %v406
    %v471 = vmul.f32 %v447, %v447
    %v472 = vmul.f32 %v409, %v409
    %v473 = vmul.f32 %v450, %v450
    %v474 = vmul.f32 %v412, %v412
    %v475 = vmul.f32 %v453, %v453
    %v476 = vmul.f32 %v415, %v415
    %v477 = vmul.f32 %v456, %v456
    %v478 = vmul.f32 %v418, %v418
    %v479 = vmul.f32 %v459, %v459
    %v480 = vmul.f32 %v421, %v421
    %v481 = vmul.f32 %v462, %v462
    %v482 = vmul.f32 %v424, %v424
    %v483 = vmul.f32 %v465, %v465
    %v484 = vmul.f32 %v427, %v427
    %v485 = vmul.f32 %v468, %v468
    %v486 = vmul.f32 %v470, %v406
    %v487 = vmul.f32 %v471, %v447
    %v488 = vmul.f32 %v472, %v409
    %v489 = vmul.f32 %v473, %v450
    %v490 = vmul.f32 %v474, %v412
    %v491 = vmul.f32 %v475, %v453
    %v492 = vmul.f32 %v476, %v415
    %v493 = vmul.f32 %v477, %v456
    %v494 = vmul.f32 %v478, %v418
    %v495 = vmul.f32 %v479, %v459
    %v496 = vmul.f32 %v480, %v421
    %v497 = vmul.f32 %v481, %v462
    %v498 = vmul.f32 %v482, %v424
    %v499 = vmul.f32 %v483, %v465
    %v500 = vmul.f32 %v484, %v427
    %v501 = vmul.f32 %v485, %v468
    %v502 = vmul.f32 %v406, 0.5
    %v503 = vmul.f32 %v447, 0.5
    %v504 = vmul.f32 %v409, 0.5
    %v505 = vmul.f32 %v450, 0.5
    %v506 = vmul.f32 %v412, 0.5
    %v507 = vmul.f32 %v453, 0.5
    %v508 = vmul.f32 %v415, 0.5
    %v509 = vmul.f32 %v456, 0.5
    %v510 = vmul.f32 %v418, 0.5
    %v511 = vmul.f32 %v459, 0.5
    %v512 = vmul.f32 %v421, 0.5
    %v513 = vmul.f32 %v462, 0.5
    %v514 = vmul.f32 %v424, 0.5
    %v515 = vmul.f32 %v465, 0.5
    %v516 = vmul.f32 %v427, 0.5
    %v517 = vmul.f32 %v468, 0.5
    %v518 = vmul.f32 %v486, 0.044715
    %v519 = vmul.f32 %v487, 0.044715
    %v520 = vmul.f32 %v488, 0.044715
    %v521 = vmul.f32 %v489, 0.044715
    %v522 = vmul.f32 %v490, 0.044715
    %v523 = vmul.f32 %v491, 0.044715
    %v524 = vmul.f32 %v492, 0.044715
    %v525 = vmul.f32 %v493, 0.044715
    %v526 = vmul.f32 %v494, 0.044715
    %v527 = vmul.f32 %v495, 0.044715
    %v528 = vmul.f32 %v496, 0.044715
    %v529 = vmul.f32 %v497, 0.044715
    %v530 = vmul.f32 %v498, 0.044715
    %v531 = vmul.f32 %v499, 0.044715
    %v532 = vmul.f32 %v500, 0.044715
    %v533 = vmul.f32 %v501, 0.044715
    %v534 = vadd.f32 %v406, %v518
    %v535 = vadd.f32 %v447, %v519
    %v536 = vadd.f32 %v409, %v520
    %v537 = vadd.f32 %v450, %v521
    %v538 = vadd.f32 %v412, %v522
    %v539 = vadd.f32 %v453, %v523
    %v540 = vadd.f32 %v415, %v524
    %v541 = vadd.f32 %v456, %v525
    %v542 = vadd.f32 %v418, %v526
    %v543 = vadd.f32 %v459, %v527
    %v544 = vadd.f32 %v421, %v528
    %v545 = vadd.f32 %v462, %v529
    %v546 = vadd.f32 %v424, %v530
    %v547 = vadd.f32 %v465, %v531
    %v548 = vadd.f32 %v427, %v532
    %v549 = vadd.f32 %v468, %v533
    %v550 = vmul.f32 %v534, 0.7978846
    %v551 = vmul.f32 %v535, 0.7978846
    %v552 = vmul.f32 %v536, 0.7978846
    %v553 = vmul.f32 %v537, 0.7978846
    %v554 = vmul.f32 %v538, 0.7978846
    %v555 = vmul.f32 %v539, 0.7978846
    %v556 = vmul.f32 %v540, 0.7978846
    %v557 = vmul.f32 %v541, 0.7978846
    %v558 = vmul.f32 %v542, 0.7978846
    %v559 = vmul.f32 %v543, 0.7978846
    %v560 = vmul.f32 %v544, 0.7978846
    %v561 = vmul.f32 %v545, 0.7978846
    %v562 = vmul.f32 %v546, 0.7978846
    %v563 = vmul.f32 %v547, 0.7978846
    %v564 = vmul.f32 %v548, 0.7978846
    %v565 = vmul.f32 %v549, 0.7978846
    %v566 = vtanh.pop %v550
    %v567 = vtanh.pop %v551
    %v568 = vtanh.pop %v552
    %v569 = vtanh.pop %v553
    %v570 = vtanh.pop %v554
    %v571 = vtanh.pop %v555
    %v572 = vtanh.pop %v556
    %v573 = vtanh.pop %v557
    %v574 = vtanh.pop %v558
    %v575 = vtanh.pop %v559
    %v576 = vtanh.pop %v560
    %v577 = vtanh.pop %v561
    %v578 = vtanh.pop %v562
    %v579 = vtanh.pop %v563
    %v580 = vtanh.pop %v564
    %v581 = vtanh.pop %v565
    %v582 = vadd.f32 %v566, 1.0
    %v583 = vadd.f32 %v567, 1.0
    %v584 = vadd.f32 %v568, 1.0
    %v585 = vadd.f32 %v569, 1.0
    %v586 = vadd.f32 %v570, 1.0
    %v587 = vadd.f32 %v571, 1.0
    %v588 = vadd.f32 %v572, 1.0
    %v589 = vadd.f32 %v573, 1.0
    %v590 = vadd.f32 %v574, 1.0
    %v591 = vadd.f32 %v575, 1.0
    %v592 = vadd.f32 %v576, 1.0
    %v593 = vadd.f32 %v577, 1.0
    %v594 = vadd.f32 %v578, 1.0
    %v595 = vadd.f32 %v579, 1.0
    %v596 = vadd.f32 %v580, 1.0
    %v597 = vadd.f32 %v581, 1.0
    %v598 = vmul.f32 %v502, %v582
    %v599 = vmul.f32 %v503, %v583
    %v600 = vmul.f32 %v504, %v584
    %v601 = vmul.f32 %v505, %v585
    %v602 = vmul.f32 %v506, %v586
    %v603 = vmul.f32 %v507, %v587
    %v604 = vmul.f32 %v508, %v588
    %v605 = vmul.f32 %v509, %v589
    %v606 = vmul.f32 %v510, %v590
    %v607 = vmul.f32 %v511, %v591
    %v608 = vmul.f32 %v512, %v592
    %v609 = vmul.f32 %v513, %v593
    %v610 = vmul.f32 %v514, %v594
    %v611 = vmul.f32 %v515, %v595
    %v612 = vmul.f32 %v516, %v596
    %v613 = vmul.f32 %v517, %v597
    %v614 = vld [vmem:[%s5] sm:$0x1]
    %v615 = vld [vmem:[#allocation2] sm:$0x1]
    %617 = vset.pattern.permute.xlu0 0
    %618 = vperm.xlu0 %617, %v615
    %v619 = vpop.permute.xlu0 %618
    %v621 = vperm.slane %v619, 0
    %v623 = vsel %vm363, %v614, 0
    %625 = vmatpush.msra.mxu0 0.0
    %626 = vmatpush.msra.mxu0 0.0
    %627 = vmatpush.msra.mxu0 0.0
    %628 = vmatpush.msra.mxu0 0.0
    %629 = vmatpush.msra.mxu0 0.0
    %630 = vmatpush.msra.mxu0 0.0
    %631 = vmatpush.msra.mxu0 0.0
    %632 = vmatpush.msra.mxu0 0.0
    %633 = vmatpush.msra.mxu0 %v612
    %634 = vmatpush.msra.mxu0 %v610
    %635 = vmatpush.msra.mxu0 %v608
    %636 = vmatpush.msra.mxu0 %v606
    %637 = vmatpush.msra.mxu0 %v604
    %638 = vmatpush.msra.mxu0 %v602
    %639 = vmatpush.msra.mxu0 %v600
    %640 = vmatpush.msra.mxu0 %v598
    %641 = vmatmul.f32.gmra.mxu0 %v623
    %v642 = vpop.f32.mrf.mxu0
    %v643 = vadd.f32 %v621, %v642
    %644 = vdwg.mxu0
    %645 = vmatpush.msra.mxu0 0.0
    %646 = vmatpush.msra.mxu0 0.0
    %647 = vmatpush.msra.mxu0 0.0
    %648 = vmatpush.msra.mxu0 0.0
    %649 = vmatpush.msra.mxu0 0.0
    %650 = vmatpush.msra.mxu0 0.0
    %651 = vmatpush.msra.mxu0 0.0
    %652 = vmatpush.msra.mxu0 0.0
    %653 = vmatpush.msra.mxu0 %v613
    %654 = vmatpush.msra.mxu0 %v611
    %655 = vmatpush.msra.mxu0 %v609
    %656 = vmatpush.msra.mxu0 %v607
    %657 = vmatpush.msra.mxu0 %v605
    %658 = vmatpush.msra.mxu0 %v603
    %659 = vmatpush.msra.mxu0 %v601
    %660 = vmatpush.msra.mxu0 %v599
    %661 = vmatmul.f32.gmra.mxu0 %v623
    %v662 = vpop.f32.mrf.mxu0
    %v663 = vadd.f32 %v621, %v662
    %664 = vdwg.mxu0
    %v667 = vrot.slane %v663, 7
    %vm668 = vcmask 1040384
    %v669 = vsel %vm668, %v643, %v667
    %v671 = vlaneseq
    %vm672 = vcmp.ge.s32.totalorder %v671, 0
    %vm673 = vcmp.lt.s32.totalorder %v671, 256
    %vm674 = vmand %vm672, %vm673
    %675 = vst.msk [vmem:[#allocation3] sm:$0x3] %vm674, %v669
    // Predicated region
    $region30: #{tpu_custom_call.1} parent=1 // pred_check
      _
    $region31: #{tpu_custom_call.1} parent=1 // pred_check_branch
      %677 = sbr.rel (0) target = $region33
    $region32: #{tpu_custom_call.1} parent=1 // pred_region
      %679 = vsyncadd [#allocation4], 0
      %s681 = sshll.u32 [#allocation3], 4
      %s682 = int_to_ptr.vmem [resolvable:$true] %s681
      %s683 = sshll.u32 %s7, 4
      %s684 = int_to_ptr.hbm [resolvable:$true] %s683
      %686 = dma.vmem_to_hbm [thread:$0]  %s682, 32, %s684, [#allocation4]
    $region33: #{tpu_custom_call.1} parent=1 // pred_fallthru
      _
    // Predicated region
    $region34: #{tpu_custom_call.1} parent=1 // pred_check
      _
    $region35: #{tpu_custom_call.1} parent=1 // pred_check_branch
      %688 = sbr.rel (0) target = $region37
    $region36: #{tpu_custom_call.1} parent=1 // pred_region
      %690 = dma.done [#allocation4], 32
    $region37: #{tpu_custom_call.1} parent=1 // pred_fallthru
      _
    %691 = vsyncpa [#allocation4], 1

</llo_original>
